<compile_context>
chip_gen: v5e
topology: v5e:2x2
jax: 0.10.0
libtpu: 0.0.40
codegen_flags: <defaults>
</compile_context>

<pallas_src>
import functools

import jax
import jax.numpy as jnp
from jax import lax
from jax.experimental import pallas as pl
from jax.experimental.pallas import tpu as pltpu


def _round_up(x, m):
    return (x + m - 1) // m * m


def _ce_loss_kernel(x_ref, tgt_ref, w_ref, out_ref, *, n_rows, tile_n):
    """One row-tile: row-wise log-softmax CE (ignore_index=0), weighted partial sum.

    x_ref:   (TN, C)      logits, native dtype (f32/bf16), cast to f32 in-kernel
    tgt_ref: (TN, 1)      int32 class indices (0 == ignore_index)
    w_ref:   (TN, 1)      weights, native dtype
    out_ref: (1, 8, 128)  f32 per-tile partial sum (broadcast -> unmasked store)
    """
    logits = x_ref[...].astype(jnp.float32)               # (TN, C)
    tgt = tgt_ref[...]                                     # (TN, 1) int32
    w = w_ref[...].astype(jnp.float32)                     # (TN, 1)

    tn, c = logits.shape

    # Row-validity: the last grid tile may over-run the true row count (logits are
    # NOT padded in the wrapper), so OOB rows hold garbage and must be masked here.
    row_ids = pl.program_id(0) * tile_n + lax.broadcasted_iota(jnp.int32, (tn, 1), 0)
    valid = (row_ids < n_rows) & (tgt != 0)                # (TN, 1); ignore_index=0

    # Fused pass over the logits tile: row max + target-logit gather from the same
    # read; class iota is (1, C) and broadcasts against the (TN, 1) targets.
    cls_ids = lax.broadcasted_iota(jnp.int32, (1, c), 1)   # (1, C)
    m = jnp.max(logits, axis=-1, keepdims=True)            # (TN, 1)
    logit_t = jnp.sum(jnp.where(cls_ids == tgt, logits, 0.0),
                      axis=-1, keepdims=True)              # (TN, 1)
    # exactly one exp per element (EUP is the near-binding slot on v7x bf16)
    lse = m + jnp.log(jnp.sum(jnp.exp(logits - m), axis=-1, keepdims=True))

    # Masked weighted contribution (mask applied AFTER the multiply so garbage
    # weights/logits in invalid rows cannot leak NaN/inf into the sum).
    contrib = jnp.where(valid, (lse - logit_t) * w, 0.0)   # (TN, 1)
    partial = jnp.sum(contrib)

    # Lane-dense (8,128) broadcast store -> unmasked vst; tiles are independent
    # ("parallel" grid axis) so both v7x TensorCores can be used.
    out_ref[...] = jnp.full(out_ref.shape, partial, dtype=jnp.float32)


def _vmem_budget_bytes():
    # Generation-aware: ~3/4 of physical VMEM, capped at 96 MiB.
    # v7x: 64 MiB -> 48 MiB; v5e/v6e: 128 MiB -> 96 MiB.
    try:
        cap = int(pltpu.get_tpu_info().vmem_capacity_bytes)
    except Exception:
        cap = 64 * 1024 * 1024
    return min(cap * 3 // 4, 96 * 1024 * 1024)


@functools.partial(jax.jit, static_argnames=("tile_n_max",))
def multi_class_loss(inputs, target, weight, tile_n_max=4096):
    """inputs: (B, L, C); target: (B, L) int; weight: (B, L) float.

    Returns scalar: mean over B*L of CE(inputs, target, ignore_index=0) * weight.
    """
    B, L, C = inputs.shape
    N = B * L

    # Native dtypes into the kernel (no HBM-doubling f32 upcast in the wrapper).
    x = inputs.reshape(N, C)
    t = target.reshape(N, 1).astype(jnp.int32)
    w = weight.reshape(N, 1)

    itemsize = jnp.dtype(inputs.dtype).itemsize
    w_itemsize = jnp.dtype(weight.dtype).itemsize
    # Native sublane tile for the narrowest participating dtype (8/16/32).
    sub = max(8, 32 // itemsize, 32 // w_itemsize)
    cp = _round_up(C, 128)                    # lane-padded class extent in VMEM

    # Per-row VMEM footprint: logits tile (x2 pipeline buffers, native dtype) +
    # in-kernel f32 cast/exp temporaries (~2 f32 rows) + lane-padded (TN, 1)
    # target/weight blocks (2 arrays x 2 pipeline buffers, padded to 128 lanes).
    bytes_per_row = 2 * cp * itemsize + 2 * cp * 4 + 2 * 2 * 128 * 4
    budget = _vmem_budget_bytes()
    headroom = 2 * 1024 * 1024                # output blocks, semaphores, misc
    cap_rows = max(sub, (budget - headroom) // bytes_per_row // sub * sub)

    # Keep >= ~8 tiles so v7x's two TensorCores (and the DMA pipeline) have work.
    rows_for_8_tiles = max(sub, _round_up(int(pl.cdiv(N, 8)), sub))
    tile_n = min(int(cap_rows), int(tile_n_max), rows_for_8_tiles)
    tile_n = int(max(sub, tile_n // sub * sub))
    num_tiles = int(pl.cdiv(N, tile_n))
    # TODO(synk): for vocab-scale C where even `sub` rows overflow VMEM, add a
    # second ("arbitrary") class-axis grid dim with an online log-sum-exp.

    kernel = functools.partial(_ce_loss_kernel, n_rows=N, tile_n=tile_n)

    cost = pl.CostEstimate(
        flops=6 * N * C,
        transcendentals=N * C,
        bytes_accessed=N * C * itemsize + N * (4 + w_itemsize)
        + num_tiles * 8 * 128 * 4,
    )

    partials = pl.pallas_call(
        kernel,
        out_shape=jax.ShapeDtypeStruct((num_tiles, 8, 128), jnp.float32),
        grid_spec=pltpu.PrefetchScalarGridSpec(
            num_scalar_prefetch=0,
            grid=(num_tiles,),
            in_specs=[
                pl.BlockSpec((tile_n, C), lambda i: (i, 0)),
                pl.BlockSpec((tile_n, 1), lambda i: (i, 0)),
                pl.BlockSpec((tile_n, 1), lambda i: (i, 0)),
            ],
            out_specs=pl.BlockSpec((1, 8, 128), lambda i: (i, 0, 0)),
        ),
        compiler_params=pltpu.CompilerParams(
            dimension_semantics=("parallel",),
            vmem_limit_bytes=int(budget),
        ),
        cost_estimate=cost,
    )(x, t, w)

    total = jnp.sum(partials[:, 0, 0])
    # .mean() over the original (B, L) elementwise product.
    return total / jnp.float32(N)


def _reference(inputs, target, weight):
    """Pure-JAX reference mirroring nn.CrossEntropyLoss(ignore_index=0, 'none')."""
    logp = jax.nn.log_softmax(inputs.astype(jnp.float32), axis=-1)
    nll = -jnp.take_along_axis(logp, target[..., None].astype(jnp.int32),
                               axis=-1)[..., 0]
    nll = jnp.where(target != 0, nll, 0.0)
    return jnp.mean(nll * weight.astype(jnp.float32))


if __name__ == "__main__":
    key = jax.random.PRNGKey(0)
    k1, k2, k3 = jax.random.split(key, 3)

    B, L, C = 2, 16, 32  # batch, sequence, num classes
    inputs = jax.random.normal(k1, (B, L, C), dtype=jnp.float32)
    target = jax.random.randint(k2, (B, L), 0, C, dtype=jnp.int32)  # 0 = ignore
    weight = jax.random.uniform(k3, (B, L), dtype=jnp.float32)

    out = multi_class_loss(inputs, target, weight)
    jax.block_until_ready(out)

    ref = _reference(inputs, target, weight)
    assert jnp.allclose(out, ref, atol=1e-5, rtol=1e-5), (out, ref)
    print("KERNEL_OK")
</pallas_src>

<mosaic_0001>
module attributes {stable_mosaic.version = 11 : i64} {
  func.func @_ce_loss_kernel(%arg0: i32, %arg1: memref<8x32xf32, #tpu.memory_space<vmem>>, %arg2: memref<8x1xi32, #tpu.memory_space<vmem>>, %arg3: memref<8x1xf32, #tpu.memory_space<vmem>>, %arg4: memref<1x8x128xf32, #tpu.memory_space<vmem>>) attributes {dimension_semantics = [#tpu.dimension_semantics<parallel>], iteration_bounds = array<i64: 4>, scalar_prefetch = 0 : i64, scratch_operands = 0 : i64, tpu.core_type = #tpu.core_type<tc>, window_params = [{transform_indices = @transform_0, window_bounds = array<i64: 8, 32>}, {transform_indices = @transform_1, window_bounds = array<i64: 8, 1>}, {transform_indices = @transform_2, window_bounds = array<i64: 8, 1>}, {transform_indices = @transform_3, window_bounds = array<i64: 1, 8, 128>}]} {
    %c0 = arith.constant 0 : index
    %c0_0 = arith.constant 0 : index
    %0 = vector.load %arg1[%c0, %c0_0] : memref<8x32xf32, #tpu.memory_space<vmem>>, vector<8x32xf32>
    %c0_1 = arith.constant 0 : index
    %c0_2 = arith.constant 0 : index
    %1 = vector.load %arg2[%c0_1, %c0_2] : memref<8x1xi32, #tpu.memory_space<vmem>>, vector<8x1xi32>
    %c0_3 = arith.constant 0 : index
    %c0_4 = arith.constant 0 : index
    %2 = vector.load %arg3[%c0_3, %c0_4] : memref<8x1xf32, #tpu.memory_space<vmem>>, vector<8x1xf32>
    %c8_i32 = arith.constant 8 : i32
    %3 = arith.muli %arg0, %c8_i32 : i32
    %4 = tpu.iota {dimensions = array<i32: 0>} : vector<8x1xi32>
    %5 = vector.broadcast %3 : i32 to vector<8x1xi32>
    %6 = arith.addi %5, %4 : vector<8x1xi32>
    %c32_i32 = arith.constant 32 : i32
    %7 = vector.broadcast %c32_i32 : i32 to vector<8x1xi32>
    %8 = arith.cmpi slt, %6, %7 : vector<8x1xi32>
    %c0_i32 = arith.constant 0 : i32
    %9 = vector.broadcast %c0_i32 : i32 to vector<8x1xi32>
    %10 = arith.cmpi ne, %1, %9 : vector<8x1xi32>
    %11 = arith.andi %8, %10 : vector<8x1xi1>
    %12 = tpu.iota {dimensions = array<i32: 1>} : vector<1x32xi32>
    %cst = arith.constant dense<0xFF800000> : vector<8xf32>
    %13 = vector.multi_reduction <maximumf>, %0, %cst [1] : vector<8x32xf32> to vector<8xf32>
    %14 = vector.shape_cast %13 : vector<8xf32> to vector<8x1xf32>
    %15 = vector.broadcast %12 : vector<1x32xi32> to vector<8x32xi32>
    %16 = vector.broadcast %1 : vector<8x1xi32> to vector<8x32xi32>
    %17 = arith.cmpi eq, %15, %16 : vector<8x32xi32>
    %cst_5 = arith.constant 0.000000e+00 : f32
    %18 = vector.broadcast %cst_5 : f32 to vector<8x32xf32>
    %19 = arith.select %17, %0, %18 : vector<8x32xi1>, vector<8x32xf32>
    %cst_6 = arith.constant dense<0.000000e+00> : vector<8xf32>
    %20 = vector.multi_reduction <add>, %19, %cst_6 [1] : vector<8x32xf32> to vector<8xf32>
    %21 = vector.shape_cast %20 : vector<8xf32> to vector<8x1xf32>
    %22 = vector.broadcast %14 : vector<8x1xf32> to vector<8x32xf32>
    %23 = arith.subf %0, %22 : vector<8x32xf32>
    %24 = math.exp %23 : vector<8x32xf32>
    %cst_7 = arith.constant dense<0.000000e+00> : vector<8xf32>
    %25 = vector.multi_reduction <add>, %24, %cst_7 [1] : vector<8x32xf32> to vector<8xf32>
    %26 = vector.shape_cast %25 : vector<8xf32> to vector<8x1xf32>
    %27 = math.log %26 : vector<8x1xf32>
    %28 = arith.addf %14, %27 : vector<8x1xf32>
    %29 = arith.subf %28, %21 : vector<8x1xf32>
    %30 = arith.mulf %29, %2 : vector<8x1xf32>
    %cst_8 = arith.constant 0.000000e+00 : f32
    %31 = vector.broadcast %cst_8 : f32 to vector<8x1xf32>
    %32 = arith.select %11, %30, %31 : vector<8x1xi1>, vector<8x1xf32>
    %33 = vector.shape_cast %32 : vector<8x1xf32> to vector<1x8x1xf32>
    %cst_9 = arith.constant dense<0.000000e+00> : vector<1xf32>
    %34 = vector.multi_reduction <add>, %33, %cst_9 [1, 2] : vector<1x8x1xf32> to vector<1xf32>
    %35 = vector.shape_cast %34 : vector<1xf32> to vector<1x1x1xf32>
    %36 = vector.extract %35[0, 0, 0] : f32 from vector<1x1x1xf32>
    %37 = vector.broadcast %36 : f32 to vector<1x8x128xf32>
    %c0_10 = arith.constant 0 : index
    %c0_11 = arith.constant 0 : index
    %c0_12 = arith.constant 0 : index
    %38 = vector.load %arg4[%c0_10, %c0_11, %c0_12] : memref<1x8x128xf32, #tpu.memory_space<vmem>>, vector<1x8x128xf32>
    tpu.vector_store %arg4[%c0_10, %c0_11, %c0_12], %37 {strides = array<i32>} : memref<1x8x128xf32, #tpu.memory_space<vmem>>, vector<1x8x128xf32>,
    return
  }
  func.func @transform_0(%arg0: i32) -> (i32, i32) {
    %c0_i32 = arith.constant 0 : i32
    %c0_i32_0 = arith.constant 0 : i32
    return %arg0, %c0_i32 : i32, i32
  }
  func.func @transform_1(%arg0: i32) -> (i32, i32) {
    %c0_i32 = arith.constant 0 : i32
    %c0_i32_0 = arith.constant 0 : i32
    return %arg0, %c0_i32 : i32, i32
  }
  func.func @transform_2(%arg0: i32) -> (i32, i32) {
    %c0_i32 = arith.constant 0 : i32
    %c0_i32_0 = arith.constant 0 : i32
    return %arg0, %c0_i32 : i32, i32
  }
  func.func @transform_3(%arg0: i32) -> (i32, i32, i32) {
    %c0_i32 = arith.constant 0 : i32
    %c0_i32_0 = arith.constant 0 : i32
    %c0_i32_1 = arith.constant 0 : i32
    return %arg0, %c0_i32, %c0_i32_0 : i32, i32, i32
  }
}

</mosaic_0001>

<llo_original>
// kernel: multi_class_loss.1
$region0: #{multi_class_loss.1}
  #allocation0 [shape = 'u32[]', space=smem, size = 0x4, offset = 0x4, fixed_abs, tag = 'smem constant byte address 0x4 - core index']
  #allocation1 [shape = 'u32[72,128]{1,0:T(1,128)}', space=vmem, size = 0x9000, scoped, tag = 'internal scratch']
  %s0 = inlined_call_operand.vmem [shape: f32[32,32], index: 0, kind: input, shape index: {}]
  %s1 = inlined_call_operand.vmem [shape: s32[32,1], index: 1, kind: input, shape index: {}]
  %s2 = inlined_call_operand.vmem [shape: f32[32,1], index: 2, kind: input, shape index: {}]
  %s3 = inlined_call_operand.vmem [shape: f32[4,8,128], index: 3, kind: output, shape index: {}]
  %s4 = sld [smem:[#allocation0]]
  $region45: #{multi_class_loss.1} parent=0
    _
  %s6 = ssub.s32 1, %s4
  %s7 = scalar_select 0, %s6, %s4
  loop: start=0, step=1, limit=6
  $region2: #{multi_class_loss.1} parent=0 // loop_pre_header
    _
  $region3: #{multi_class_loss.1} parent=0 // loop_header
    %s9 = sphi 0, %s13
    %p10 = scmp.ge.s32.totalorder %s9, 6
    %s19 = sphi 0, %s21
    %s22 = sphi 0, %s19
    %s23 = sphi 0, %s22
    %s39 = sphi 0, %s23
    %s45 = sphi 0, %s47
    %s48 = sphi 0, %s45
    %s49 = sphi 0, %s48
    %s65 = sphi 0, %s49
    %s71 = sphi 0, %s73
    %s74 = sphi 0, %s71
    %s75 = sphi 0, %s74
    %s91 = sphi 0, %s75
    %s97 = sphi 0, %s99
    %s100 = sphi 0, %s97
    %s101 = sphi 0, %s100
    %s117 = sphi 0, %s101
  $region4: #{multi_class_loss.1} parent=0 // loop_header_branch
    %12 = sbr.rel (%p10) target = $region8
  $region5: #{multi_class_loss.1} parent=0 // loop_body
    %s14 = ssub.s32 %s9, 1
    %s15 = ssub.s32 %s9, 2
    %s16 = sadd.s32 %s9, 1
    %s17 = ssub.s32 %s9, %s16
    %p18 = scmp.eq.s32.totalorder %s17, 0
    %s20 = sadd.s32 %s19, 1
    %s21 = scalar_select %p18, %s19, %s20
    %p24 = pneg %p18
    %p25 = scmp.eq.s32.totalorder %s9, 3
    %p26 = por %p24, %p25
    %p27 = scmp.ne.s32.totalorder %s19, %s22
    %p28 = scmp.eq.s32.totalorder %s9, 0
    %p29 = por %p27, %p28
    %p30 = scmp.ne.s32.totalorder %s19, %s22
    %p31 = scmp.eq.s32.totalorder %s14, 3
    %p32 = por %p30, %p31
    %p33 = scmp.ne.s32.totalorder %s22, %s23
    %p34 = scmp.eq.s32.totalorder %s14, 0
    %p35 = por %p33, %p34
    %p36 = scmp.ne.s32.totalorder %s22, %s23
    %p37 = scmp.eq.s32.totalorder %s15, 3
    %p38 = por %p36, %p37
    %p40 = scmp.ne.s32.totalorder %s23, %s39
    %p41 = scmp.eq.s32.totalorder %s15, 0
    %p42 = por %p40, %p41
    %s43 = ssub.s32 %s9, %s16
    %p44 = scmp.eq.s32.totalorder %s43, 0
    %s46 = sadd.s32 %s45, 1
    %s47 = scalar_select %p44, %s45, %s46
    %p50 = pneg %p44
    %p51 = scmp.eq.s32.totalorder %s9, 3
    %p52 = por %p50, %p51
    %p53 = scmp.ne.s32.totalorder %s45, %s48
    %p54 = scmp.eq.s32.totalorder %s9, 0
    %p55 = por %p53, %p54
    %p56 = scmp.ne.s32.totalorder %s45, %s48
    %p57 = scmp.eq.s32.totalorder %s14, 3
    %p58 = por %p56, %p57
    %p59 = scmp.ne.s32.totalorder %s48, %s49
    %p60 = scmp.eq.s32.totalorder %s14, 0
    %p61 = por %p59, %p60
    %p62 = scmp.ne.s32.totalorder %s48, %s49
    %p63 = scmp.eq.s32.totalorder %s15, 3
    %p64 = por %p62, %p63
    %p66 = scmp.ne.s32.totalorder %s49, %s65
    %p67 = scmp.eq.s32.totalorder %s15, 0
    %p68 = por %p66, %p67
    %s69 = ssub.s32 %s9, %s16
    %p70 = scmp.eq.s32.totalorder %s69, 0
    %s72 = sadd.s32 %s71, 1
    %s73 = scalar_select %p70, %s71, %s72
    %p76 = pneg %p70
    %p77 = scmp.eq.s32.totalorder %s9, 3
    %p78 = por %p76, %p77
    %p79 = scmp.ne.s32.totalorder %s71, %s74
    %p80 = scmp.eq.s32.totalorder %s9, 0
    %p81 = por %p79, %p80
    %p82 = scmp.ne.s32.totalorder %s71, %s74
    %p83 = scmp.eq.s32.totalorder %s14, 3
    %p84 = por %p82, %p83
    %p85 = scmp.ne.s32.totalorder %s74, %s75
    %p86 = scmp.eq.s32.totalorder %s14, 0
    %p87 = por %p85, %p86
    %p88 = scmp.ne.s32.totalorder %s74, %s75
    %p89 = scmp.eq.s32.totalorder %s15, 3
    %p90 = por %p88, %p89
    %p92 = scmp.ne.s32.totalorder %s75, %s91
    %p93 = scmp.eq.s32.totalorder %s15, 0
    %p94 = por %p92, %p93
    %s95 = ssub.s32 %s9, %s16
    %p96 = scmp.eq.s32.totalorder %s95, 0
    %s98 = sadd.s32 %s97, 1
    %s99 = scalar_select %p96, %s97, %s98
    %p102 = pneg %p96
    %p103 = scmp.eq.s32.totalorder %s9, 3
    %p104 = por %p102, %p103
    %p105 = scmp.ne.s32.totalorder %s97, %s100
    %p106 = scmp.eq.s32.totalorder %s9, 0
    %p107 = por %p105, %p106
    %p108 = scmp.ne.s32.totalorder %s97, %s100
    %p109 = scmp.eq.s32.totalorder %s14, 3
    %p110 = por %p108, %p109
    %p111 = scmp.ne.s32.totalorder %s100, %s101
    %p112 = scmp.eq.s32.totalorder %s14, 0
    %p113 = por %p111, %p112
    %p114 = scmp.ne.s32.totalorder %s100, %s101
    %p115 = scmp.eq.s32.totalorder %s15, 3
    %p116 = por %p114, %p115
    %p118 = scmp.ne.s32.totalorder %s101, %s117
    %p119 = scmp.eq.s32.totalorder %s15, 0
    %p120 = por %p118, %p119
    %p121 = scmp.le.s32.totalorder 1, %s9
    %p122 = scmp.lt.s32.totalorder %s9, 5
    %p123 = pnand %p121, %p122
    %p124 = pneg %p123
    // Predicated region
    $region9: #{multi_class_loss.1} parent=5 // pred_check
      _
    $region10: #{multi_class_loss.1} parent=5 // pred_check_branch
      %126 = sbr.rel (%p123) target = $region12
    $region11: #{multi_class_loss.1} parent=5 // pred_region
      %s127 = ssub.s32 %s9, 1
    $region12: #{multi_class_loss.1} parent=5 // pred_fallthru
      _
    %p128 = scmp.lt.s32.totalorder %s9, 4
    // Predicated region
    $region13: #{multi_class_loss.1} parent=5 // pred_check
      %p129 = pneg %p128
    $region14: #{multi_class_loss.1} parent=5 // pred_check_branch
      %131 = sbr.rel (%p129) target = $region16
    $region15: #{multi_class_loss.1} parent=5 // pred_region
      // Predicated region
      $region17: #{multi_class_loss.1} parent=15 // pred_check
        %p132 = pneg %p29
      $region18: #{multi_class_loss.1} parent=15 // pred_check_branch
        %134 = sbr.rel (%p132) target = $region20
      $region19: #{multi_class_loss.1} parent=15 // pred_region
        %p135 = scmp.lt.s32.totalorder %s9, 3
        %s136 = scalar_select %p135, %s9, 3
        %s137 = smul.addr %s136, 8
        %s138 = scalar_lea.vmem %s0, %s137
      $region20: #{multi_class_loss.1} parent=15 // pred_fallthru
        _
      // Predicated region
      $region21: #{multi_class_loss.1} parent=15 // pred_check
        %p139 = pneg %p55
      $region22: #{multi_class_loss.1} parent=15 // pred_check_branch
        %141 = sbr.rel (%p139) target = $region24
      $region23: #{multi_class_loss.1} parent=15 // pred_region
        %p142 = scmp.lt.s32.totalorder %s9, 3
        %s143 = scalar_select %p142, %s9, 3
        %s144 = smul.addr %s143, 8
        %s145 = scalar_lea.vmem %s1, %s144
      $region24: #{multi_class_loss.1} parent=15 // pred_fallthru
        _
      // Predicated region
      $region25: #{multi_class_loss.1} parent=15 // pred_check
        %p146 = pneg %p81
      $region26: #{multi_class_loss.1} parent=15 // pred_check_branch
        %148 = sbr.rel (%p146) target = $region28
      $region27: #{multi_class_loss.1} parent=15 // pred_region
        %p149 = scmp.lt.s32.totalorder %s9, 3
        %s150 = scalar_select %p149, %s9, 3
        %s151 = smul.addr %s150, 8
        %s152 = scalar_lea.vmem %s2, %s151
      $region28: #{multi_class_loss.1} parent=15 // pred_fallthru
        _
    $region16: #{multi_class_loss.1} parent=5 // pred_fallthru
      _
    %p153 = scmp.le.s32.totalorder 1, %s9
    %p154 = scmp.lt.s32.totalorder %s9, 5
    %p155 = pnand %p153, %p154
    %p156 = pneg %p155
    // Predicated region
    $region29: #{multi_class_loss.1} parent=5 // pred_check
      _
    $region30: #{multi_class_loss.1} parent=5 // pred_check_branch
      %158 = sbr.rel (%p155) target = $region32
    $region31: #{multi_class_loss.1} parent=5 // pred_region
      %s159 = ssub.s32 %s9, 1
      %p160 = scmp.lt.s32.totalorder %s14, 3
      %s161 = scalar_select %p160, %s14, 3
      %s162 = smul.addr %s161, 8
      %s163 = scalar_lea.vmem %s0, %s162
      %p164 = pneg %p35
      %p165 = pneg %p32
      %p166 = scmp.lt.s32.totalorder %s14, 3
      %s167 = scalar_select %p166, %s14, 3
      %s168 = smul.addr %s167, 8
      %s169 = scalar_lea.vmem %s1, %s168
      %p170 = pneg %p61
      %p171 = pneg %p58
      %p172 = scmp.lt.s32.totalorder %s14, 3
      %s173 = scalar_select %p172, %s14, 3
      %s174 = smul.addr %s173, 8
      %s175 = scalar_lea.vmem %s2, %s174
      %p176 = pneg %p87
      %p177 = pneg %p84
      %p178 = pneg %p113
      %p179 = pneg %p110
      %p180 = scmp.lt.s32.totalorder %s14, 3
      %s181 = scalar_select %p180, %s14, 3
      %s182 = smul.addr %s181, 8
      %s183 = scalar_lea.vmem %s3, %s182
      %p184 = scmp.lt.s32.totalorder %s14, 3
      %s185 = scalar_select %p184, %s14, 3
      %s186 = smul.addr %s185, 8
      %s187 = scalar_lea.vmem %s0, %s186
      %p188 = scmp.lt.s32.totalorder %s14, 3
      %s189 = scalar_select %p188, %s14, 3
      %s190 = smul.addr %s189, 8
      %s191 = scalar_lea.vmem %s1, %s190
      %p192 = scmp.lt.s32.totalorder %s14, 3
      %s193 = scalar_select %p192, %s14, 3
      %s194 = smul.addr %s193, 8
      %s195 = scalar_lea.vmem %s2, %s194
      %p196 = scmp.lt.s32.totalorder %s14, 3
      %s197 = scalar_select %p196, %s14, 3
      %s198 = smul.addr %s197, 8
      %s199 = scalar_lea.vmem %s3, %s198
      %v200 = vld [vmem:[%s187] sm:$0xff]
      %v201 = vld [vmem:[%s191] sm:$0xff]
      %v202 = vld [vmem:[%s195] sm:$0xff]
      %s203 = smul.u32 %s14, 8
      %v204 = vlaneseq
      %v205 = vshrl.u32 %v204, 7
      %v206 = vstv %s203
      %v207 = vadd.s32 %v206, %v205
      %vm208 = vcmp.lt.s32.totalorder %v207, 32
      %vm209 = vcmp.ne.s32.totalorder %v201, 0
      %vm210 = vmand %vm208, %vm209
      %v211 = vlaneseq
      %v212 = vand.u32 %v211, 127
      %vm213 = vcmask 261120
      %v214 = vsel %vm213, %v200, -inf
      %215 = vmax.xlane.f32.xlu0 %v214
      %v216 = vpop.xlane.xlu0 %215
      %217 = vset.pattern.permute.xlu0 0
      %218 = vperm.xlu0 %217, %v201
      %v219 = vpop.permute.xlu0 %218
      %vm220 = vcmp.eq.s32.totalorder %v212, %v219
      %v221 = vsel %vm220, %v200, 0.0
      %v222 = vsel %vm213, %v221, 0.0
      %223 = vadd.xlane.f32.xlu0 %v222
      %v224 = vpop.xlane.xlu0 %223
      %v225 = vsub.f32 %v200, %v216
      %v226 = vmul.f32 %v225, 1.442695
      %v227 = vpow.pop %v226
      %v228 = vsel %vm213, %v227, 0.0
      %229 = vadd.xlane.f32.xlu0 %v228
      %v230 = vpop.xlane.xlu0 %229
      %v231 = vlog2.pop %v230
      %v232 = vmul.f32 %v231, 0.6931472
      %v233 = vadd.f32 %v216, %v232
      %v234 = vsub.f32 %v233, %v224
      %v235 = vmul.f32 %v234, %v202
      %v236 = vsel %vm210, %v235, 0.0
      %vm237 = vcmask 7168
      %v238 = vsel %vm237, %v236, 0.0
      %239 = vadd.xlane.f32.xlu0 %v238
      %v240 = vpop.xlane.xlu0 %239
      %v241 = vrot.slane %v240, 4
      %v242 = vadd.f32 %v240, %v241
      %v243 = vrot.slane %v242, 2
      %v244 = vadd.f32 %v242, %v243
      %v245 = vrot.slane %v244, 1
      %v246 = vadd.f32 %v244, %v245
      %s247 = vtos %v246
      %v248 = vstv %s247
      %249 = vst [vmem:[%s199] sm:$0xff] %v248
      %p250 = scmp.lt.s32.totalorder %s14, 3
      %s251 = scalar_select %p250, %s14, 3
      %s252 = smul.addr %s251, 8
      %s253 = scalar_lea.vmem %s3, %s252
      // Predicated region
      $region33: #{multi_class_loss.1} parent=31 // pred_check
        %p254 = pneg %p110
      $region34: #{multi_class_loss.1} parent=31 // pred_check_branch
        %256 = sbr.rel (%p254) target = $region36
      $region35: #{multi_class_loss.1} parent=31 // pred_region
        _
      $region36: #{multi_class_loss.1} parent=31 // pred_fallthru
        _
    $region32: #{multi_class_loss.1} parent=5 // pred_fallthru
      _
    %p257 = scmp.le.s32.totalorder 2, %s9
    // Predicated region
    $region37: #{multi_class_loss.1} parent=5 // pred_check
      %p258 = pneg %p257
    $region38: #{multi_class_loss.1} parent=5 // pred_check_branch
      %260 = sbr.rel (%p258) target = $region40
    $region39: #{multi_class_loss.1} parent=5 // pred_region
      %s261 = ssub.s32 %s9, 2
      // Predicated region
      $region41: #{multi_class_loss.1} parent=39 // pred_check
        %p262 = pneg %p116
      $region42: #{multi_class_loss.1} parent=39 // pred_check_branch
        %264 = sbr.rel (%p262) target = $region44
      $region43: #{multi_class_loss.1} parent=39 // pred_region
        %p265 = scmp.lt.s32.totalorder %s15, 3
        %s266 = scalar_select %p265, %s15, 3
        %s267 = smul.addr %s266, 8
        %s268 = scalar_lea.vmem %s3, %s267
      $region44: #{multi_class_loss.1} parent=39 // pred_fallthru
        _
    $region40: #{multi_class_loss.1} parent=5 // pred_fallthru
      _
  $region6: #{multi_class_loss.1} parent=0 // loop_footer
    %s13 = sadd.s32 1, %s9
  $region7: #{multi_class_loss.1} parent=0 // loop_footer_branch
    %8 = sbr.rel target = $region3
  $region8: #{multi_class_loss.1} parent=0 // loop_exit
    _

</llo_original>
